<compile_context>
chip_gen: v7x
topology: tpu7x:2x2x1
jax: 0.10.0
libtpu: 0.0.40
codegen_flags: <defaults>
</compile_context>

<pallas_src>
import math
import functools

import jax
import jax.numpy as jnp
from jax import lax
from jax.experimental import pallas as pl
from jax.experimental.pallas import tpu as pltpu

OUT_PAD = 128  # lane-dense padded head width (real logits = first out_dim lanes)


def _mlp_kernel(x_ref, w1_ref, b1_ref, w23_ref, b23_ref, o_ref):
    """Fused MLP on one (TM, 784) batch tile.

    x arrives f32 and is cast to bf16 in-register; weights are bf16, biases f32;
    both matmuls accumulate in f32 on the MXU.  Linear2 and the head are folded:
        out = gelu(x @ W1 + b1) @ (W2 @ W3_pad) + (b2 @ W3_pad + b3_pad)
    """
    x = x_ref[...].astype(jnp.bfloat16)  # in-kernel cast: no extra HBM pass

    # Layer 1: Linear(784 -> 128) + exact (erf) GELU, matching nn.GELU().
    h1 = jnp.dot(x, w1_ref[...], preferred_element_type=jnp.float32) + b1_ref[...]
    h1 = 0.5 * h1 * (1.0 + lax.erf(h1 * (1.0 / math.sqrt(2.0))))

    # Dropout(0.25) / Dropout(0.35) / Dropout(0.35): identity in eval mode.

    # Folded Linear(128->128) + Linear(128->10, padded to 128 lanes).
    out = jnp.dot(h1.astype(jnp.bfloat16), w23_ref[...],
                  preferred_element_type=jnp.float32) + b23_ref[...]
    o_ref[...] = out.astype(o_ref.dtype)


def prepare_params(w1, b1, w2, b2, w3, b3):
    """One-time weight prep: bf16 casts, head lane-padding, eval-mode W2@W3 fold.

    Keeps the per-call jitted path a single pallas_call (+ tiny slice)."""
    out_dim = w3.shape[1]
    w3p = jnp.pad(w3.astype(jnp.float32), ((0, 0), (0, OUT_PAD - out_dim)))
    b3p = jnp.pad(b3.astype(jnp.float32).reshape(1, -1), ((0, 0), (0, OUT_PAD - out_dim)))
    # Exact in f32: no nonlinearity between Linear2 and the head, dropout = identity.
    w23 = w2.astype(jnp.float32) @ w3p
    b23 = b2.astype(jnp.float32).reshape(1, -1) @ w3p + b3p
    return (w1.astype(jnp.bfloat16),
            b1.astype(jnp.float32).reshape(1, -1),
            w23.astype(jnp.bfloat16),
            b23.astype(jnp.float32))


@functools.partial(jax.jit, static_argnames=("out_dim",))
def mlp_forward(x, w1b, b1, w23b, b23, *, out_dim=10):
    """x: (B, C, H, W) float32 NCHW.  Returns (B, out_dim) float32 logits."""
    B = x.shape[0]
    x_flat = x.reshape(B, -1).astype(jnp.float32)  # flatten (glue, plain JAX)
    in_features = x_flat.shape[1]
    hid1 = w1b.shape[1]

    # Pad batch only to the sublane multiple (8); never to a full tile.
    B8 = ((B + 7) // 8) * 8
    if B8 != B:
        x_flat = jnp.pad(x_flat, ((0, B8 - B), (0, 0)))

    # Batch tile: big tiles get close to the HBM roofline; keep >=2 grid steps
    # when the batch allows so both v7x TensorCores get work.  Ragged tails are
    # handled by the Pallas boundary block (padded rows are discarded on write).
    if B8 >= 1024:
        TM = 512
    elif B8 >= 16:
        TM = ((B8 // 2) + 7) // 8 * 8
    else:
        TM = B8
    grid = (pl.cdiv(B8, TM),)

    const2d = lambda i: (0, 0)  # resident weights / biases

    flops = 2 * B8 * (in_features * hid1 + hid1 * OUT_PAD)
    bytes_accessed = (
        B8 * in_features * 4 + B8 * OUT_PAD * 2                    # x in (f32), out (bf16)
        + (in_features * hid1 + hid1 * OUT_PAD) * 2                # bf16 weights
        + (hid1 + OUT_PAD) * 4                                     # f32 biases
    )
    cost = pl.CostEstimate(flops=flops,
                           transcendentals=B8 * hid1,
                           bytes_accessed=bytes_accessed)

    out_padded = pl.pallas_call(
        _mlp_kernel,
        out_shape=jax.ShapeDtypeStruct((B8, OUT_PAD), jnp.bfloat16),
        grid=grid,
        in_specs=[
            pl.BlockSpec((TM, in_features), lambda i: (i, 0)),   # x tile (f32, cast in kernel)
            pl.BlockSpec((in_features, hid1), const2d),          # w1 (resident, bf16)
            pl.BlockSpec((1, hid1), const2d),                    # b1 (f32)
            pl.BlockSpec((hid1, OUT_PAD), const2d),              # w23 (resident, bf16)
            pl.BlockSpec((1, OUT_PAD), const2d),                 # b23 (f32)
        ],
        out_specs=pl.BlockSpec((TM, OUT_PAD), lambda i: (i, 0)),
        compiler_params=pltpu.CompilerParams(
            dimension_semantics=("parallel",),
        ),
        cost_estimate=cost,
    )(x_flat, w1b, b1, w23b, b23)

    # Slice the real logits back out; cast to f32 to match the PyTorch module.
    return out_padded[:B, :out_dim].astype(jnp.float32)


def init_params(key, in_features=784, hidden1=128, hidden2=128, out_dim=10):
    """Deterministic init mimicking PyTorch nn.Linear default (U[-1/sqrt(fan_in), 1/sqrt(fan_in)])."""
    ks = jax.random.split(key, 6)

    def lin(kw, kb, fan_in, fan_out):
        bound = 1.0 / math.sqrt(fan_in)
        w = jax.random.uniform(kw, (fan_in, fan_out), jnp.float32, -bound, bound)
        b = jax.random.uniform(kb, (1, fan_out), jnp.float32, -bound, bound)
        return w, b

    w1, b1 = lin(ks[0], ks[1], in_features, hidden1)
    w2, b2 = lin(ks[2], ks[3], hidden1, hidden2)
    w3, b3 = lin(ks[4], ks[5], hidden2, out_dim)
    return w1, b1, w2, b2, w3, b3


if __name__ == "__main__":
    key = jax.random.PRNGKey(0)
    k_x, k_p = jax.random.split(key)

    # Small, module-consistent shapes: batch=2, 1x28x28 input.
    x = jax.random.normal(k_x, (2, 1, 28, 28), jnp.float32)
    w1, b1, w2, b2, w3, b3 = init_params(k_p)

    # One-time weight prep (bf16 casts, head padding, eval-mode W2@W3 fold).
    w1b, b1f, w23b, b23f = prepare_params(w1, b1, w2, b2, w3, b3)

    out = mlp_forward(x, w1b, b1f, w23b, b23f, out_dim=w3.shape[1])
    jax.block_until_ready(out)

    # Sanity check against pure-JAX f32 reference (loose tolerance: kernel uses
    # bf16 inputs/weights with f32 accumulation and bf16 output rounding).
    xf = x.reshape(x.shape[0], -1)
    h1 = xf @ w1 + b1
    h1 = 0.5 * h1 * (1.0 + lax.erf(h1 / math.sqrt(2.0)))
    ref = (h1 @ w2 + b2) @ w3 + b3
    assert out.shape == (2, 10)
    assert jnp.allclose(out, ref, atol=6e-2, rtol=6e-2)

    print("KERNEL_OK")
</pallas_src>

<mosaic_0001>
module attributes {stable_mosaic.version = 11 : i64} {
  func.func @_mlp_kernel(%arg0: i32, %arg1: memref<8x784xf32, #tpu.memory_space<vmem>>, %arg2: memref<784x128xbf16, #tpu.memory_space<vmem>>, %arg3: memref<1x128xf32, #tpu.memory_space<vmem>>, %arg4: memref<128x128xbf16, #tpu.memory_space<vmem>>, %arg5: memref<1x128xf32, #tpu.memory_space<vmem>>, %arg6: memref<8x128xbf16, #tpu.memory_space<vmem>>) attributes {dimension_semantics = [#tpu.dimension_semantics<parallel>], iteration_bounds = array<i64: 1>, scalar_prefetch = 0 : i64, scratch_operands = 0 : i64, tpu.core_type = #tpu.core_type<tc>, window_params = [{transform_indices = @transform_0, window_bounds = array<i64: 8, 784>}, {pipeline_mode = #tpu.pipeline_mode<synchronous>, transform_indices = @transform_1, window_bounds = array<i64: 784, 128>}, {pipeline_mode = #tpu.pipeline_mode<synchronous>, transform_indices = @transform_2, window_bounds = array<i64: 1, 128>}, {pipeline_mode = #tpu.pipeline_mode<synchronous>, transform_indices = @transform_3, window_bounds = array<i64: 128, 128>}, {pipeline_mode = #tpu.pipeline_mode<synchronous>, transform_indices = @transform_4, window_bounds = array<i64: 1, 128>}, {transform_indices = @transform_5, window_bounds = array<i64: 8, 128>}]} {
    %c0 = arith.constant 0 : index
    %c0_0 = arith.constant 0 : index
    %0 = vector.load %arg1[%c0, %c0_0] : memref<8x784xf32, #tpu.memory_space<vmem>>, vector<8x784xf32>
    %1 = arith.truncf %0 : vector<8x784xf32> to vector<8x784xbf16>
    %c0_1 = arith.constant 0 : index
    %c0_2 = arith.constant 0 : index
    %2 = vector.load %arg2[%c0_1, %c0_2] : memref<784x128xbf16, #tpu.memory_space<vmem>>, vector<784x128xbf16>
    %cst = arith.constant dense<0.000000e+00> : vector<8x128xf32>
    %3 = tpu.matmul %1, %2, %cst {dimension_numbers = #tpu.dot_dimension_numbers<[1], [0], [0], [1], [0, 0, 1, 1], [], []>} : vector<8x784xbf16>, vector<784x128xbf16>, vector<8x128xf32> -> vector<8x128xf32>
    %c0_3 = arith.constant 0 : index
    %c0_4 = arith.constant 0 : index
    %4 = vector.load %arg3[%c0_3, %c0_4] : memref<1x128xf32, #tpu.memory_space<vmem>>, vector<1x128xf32>
    %5 = vector.broadcast %4 : vector<1x128xf32> to vector<8x128xf32>
    %6 = arith.addf %3, %5 : vector<8x128xf32>
    %cst_5 = arith.constant 5.000000e-01 : f32
    %7 = vector.broadcast %cst_5 : f32 to vector<8x128xf32>
    %8 = arith.mulf %7, %6 : vector<8x128xf32>
    %cst_6 = arith.constant 0.707106769 : f32
    %9 = vector.broadcast %cst_6 : f32 to vector<8x128xf32>
    %10 = arith.mulf %6, %9 : vector<8x128xf32>
    %11 = math.erf %10 : vector<8x128xf32>
    %cst_7 = arith.constant 1.000000e+00 : f32
    %12 = vector.broadcast %cst_7 : f32 to vector<8x128xf32>
    %13 = arith.addf %12, %11 : vector<8x128xf32>
    %14 = arith.mulf %8, %13 : vector<8x128xf32>
    %15 = arith.truncf %14 : vector<8x128xf32> to vector<8x128xbf16>
    %c0_8 = arith.constant 0 : index
    %c0_9 = arith.constant 0 : index
    %16 = vector.load %arg4[%c0_8, %c0_9] : memref<128x128xbf16, #tpu.memory_space<vmem>>, vector<128x128xbf16>
    %cst_10 = arith.constant dense<0.000000e+00> : vector<8x128xf32>
    %17 = tpu.matmul %15, %16, %cst_10 {dimension_numbers = #tpu.dot_dimension_numbers<[1], [0], [0], [1], [0, 0, 1, 1], [], []>} : vector<8x128xbf16>, vector<128x128xbf16>, vector<8x128xf32> -> vector<8x128xf32>
    %c0_11 = arith.constant 0 : index
    %c0_12 = arith.constant 0 : index
    %18 = vector.load %arg5[%c0_11, %c0_12] : memref<1x128xf32, #tpu.memory_space<vmem>>, vector<1x128xf32>
    %19 = vector.broadcast %18 : vector<1x128xf32> to vector<8x128xf32>
    %20 = arith.addf %17, %19 : vector<8x128xf32>
    %21 = arith.truncf %20 : vector<8x128xf32> to vector<8x128xbf16>
    %c0_13 = arith.constant 0 : index
    %c0_14 = arith.constant 0 : index
    %22 = vector.load %arg6[%c0_13, %c0_14] : memref<8x128xbf16, #tpu.memory_space<vmem>>, vector<8x128xbf16>
    tpu.vector_store %arg6[%c0_13, %c0_14], %21 {strides = array<i32>} : memref<8x128xbf16, #tpu.memory_space<vmem>>, vector<8x128xbf16>,
    return
  }
  func.func @transform_0(%arg0: i32) -> (i32, i32) {
    %c0_i32 = arith.constant 0 : i32
    %c0_i32_0 = arith.constant 0 : i32
    return %arg0, %c0_i32 : i32, i32
  }
  func.func @transform_1(%arg0: i32) -> (i32, i32) {
    %c0_i32 = arith.constant 0 : i32
    %c0_i32_0 = arith.constant 0 : i32
    %c0_i32_1 = arith.constant 0 : i32
    return %c0_i32, %c0_i32_0 : i32, i32
  }
  func.func @transform_2(%arg0: i32) -> (i32, i32) {
    %c0_i32 = arith.constant 0 : i32
    %c0_i32_0 = arith.constant 0 : i32
    %c0_i32_1 = arith.constant 0 : i32
    return %c0_i32, %c0_i32_0 : i32, i32
  }
  func.func @transform_3(%arg0: i32) -> (i32, i32) {
    %c0_i32 = arith.constant 0 : i32
    %c0_i32_0 = arith.constant 0 : i32
    %c0_i32_1 = arith.constant 0 : i32
    return %c0_i32, %c0_i32_0 : i32, i32
  }
  func.func @transform_4(%arg0: i32) -> (i32, i32) {
    %c0_i32 = arith.constant 0 : i32
    %c0_i32_0 = arith.constant 0 : i32
    %c0_i32_1 = arith.constant 0 : i32
    return %c0_i32, %c0_i32_0 : i32, i32
  }
  func.func @transform_5(%arg0: i32) -> (i32, i32) {
    %c0_i32 = arith.constant 0 : i32
    %c0_i32_0 = arith.constant 0 : i32
    return %arg0, %c0_i32 : i32, i32
  }
}

</mosaic_0001>

<llo_original>
// kernel: mlp_forward.1
$region0: #{mlp_forward.1}
  #allocation0 [shape = 'u32[]', space=smem, size = 0x4, offset = 0x4, fixed_abs, tag = 'smem constant byte address 0x4 - core index']
  #allocation1 [shape = 'u32[144,128]{1,0:T(1,128)}', space=vmem, size = 0x12000, scoped, tag = 'internal scratch']
  %s0 = inlined_call_operand.vmem [shape: f32[8,784], index: 0, kind: input, shape index: {}]
  %s1 = inlined_call_operand.hbm [shape: bf16[784,128], index: 1, kind: input, shape index: {}]
  %s2 = inlined_call_operand.vmem [shape: f32[1,128], index: 2, kind: input, shape index: {}]
  %s3 = inlined_call_operand.vmem [shape: bf16[128,128], index: 3, kind: input, shape index: {}]
  %s4 = inlined_call_operand.vmem [shape: f32[1,128], index: 4, kind: input, shape index: {}]
  %s5 = inlined_call_operand.vmem [shape: bf16[8,128], index: 5, kind: output, shape index: {}]
  %s6 = sld [smem:[#allocation0]]
  $region34: #{mlp_forward.1} parent=0
    _
  %s8 = ssub.s32 1, %s6
  %s9 = scalar_select 0, %s8, %s6
  $region1: #{mlp_forward.1} parent=0
    #allocation2 [shape = 'u8[200704]{0}', space=vmem, size = 0x31000, scoped, tag = 'input window, operand 1, single buffered']
    #allocation3 [shape = 's32[1]{0}', space=sflag, size = 0x4, scoped, tag = 'scoped memory for mlp_forward.1']
    %10 = vsyncpa [#allocation3], 0
    // Predicated region
    $region2: #{mlp_forward.1} parent=1 // pred_check
      _
    $region3: #{mlp_forward.1} parent=1 // pred_check_branch
      %12 = sbr.rel (0) target = $region5
    $region4: #{mlp_forward.1} parent=1 // pred_region
      _
    $region5: #{mlp_forward.1} parent=1 // pred_fallthru
      _
    // Predicated region
    $region6: #{mlp_forward.1} parent=1 // pred_check
      _
    $region7: #{mlp_forward.1} parent=1 // pred_check_branch
      %14 = sbr.rel (0) target = $region9
    $region8: #{mlp_forward.1} parent=1 // pred_region
      %s16 = ssub.s32 6272, 6272
      %17 = vsyncadd [#allocation3], %s16
      %s18 = sshll.u32 [#allocation2], 4
      %s19 = int_to_ptr.vmem [resolvable:$true] %s18
      %24 = dma.hbm_to_vmem [thread:$0]  %s1, 6272, %s19, [#allocation3], 64, 64, 4
    $region9: #{mlp_forward.1} parent=1 // pred_fallthru
      _
    // Predicated region
    $region10: #{mlp_forward.1} parent=1 // pred_check
      _
    $region11: #{mlp_forward.1} parent=1 // pred_check_branch
      %26 = sbr.rel (0) target = $region13
    $region12: #{mlp_forward.1} parent=1 // pred_region
      _
    $region13: #{mlp_forward.1} parent=1 // pred_fallthru
      _
    // Predicated region
    $region14: #{mlp_forward.1} parent=1 // pred_check
      _
    $region15: #{mlp_forward.1} parent=1 // pred_check_branch
      %28 = sbr.rel (0) target = $region17
    $region16: #{mlp_forward.1} parent=1 // pred_region
      _
    $region17: #{mlp_forward.1} parent=1 // pred_fallthru
      _
    // Predicated region
    $region18: #{mlp_forward.1} parent=1 // pred_check
      _
    $region19: #{mlp_forward.1} parent=1 // pred_check_branch
      %30 = sbr.rel (0) target = $region21
    $region20: #{mlp_forward.1} parent=1 // pred_region
      _
    $region21: #{mlp_forward.1} parent=1 // pred_fallthru
      _
    // Predicated region
    $region22: #{mlp_forward.1} parent=1 // pred_check
      _
    $region23: #{mlp_forward.1} parent=1 // pred_check_branch
      %32 = sbr.rel (0) target = $region25
    $region24: #{mlp_forward.1} parent=1 // pred_region
      %33 = dma.done [#allocation3], 6272
    $region25: #{mlp_forward.1} parent=1 // pred_fallthru
      _
    %v35 = vld [vmem:[%s0] sm:$0xff]
    %v36 = vld [vmem:[%s0 + $0x8] sm:$0xff]
    %v37 = vld [vmem:[%s0 + $0x10] sm:$0xff]
    %v38 = vld [vmem:[%s0 + $0x18] sm:$0xff]
    %v39 = vld [vmem:[%s0 + $0x20] sm:$0xff]
    %v40 = vld [vmem:[%s0 + $0x28] sm:$0xff]
    %v41 = vld [vmem:[%s0 + $0x30] sm:$0xff]
    %v42 = vpack.c.bf16 %v35, %v35
    %v43 = vpack.c.bf16 %v36, %v36
    %v44 = vpack.c.bf16 %v37, %v37
    %v45 = vpack.c.bf16 %v38, %v38
    %v46 = vpack.c.bf16 %v39, %v39
    %v47 = vpack.c.bf16 %v40, %v40
    %v48 = vpack.c.bf16 %v41, %v41
    %v49 = vld [vmem:[#allocation2] sm:$0xf]
    %v50 = vld [vmem:[#allocation2 + $0x4] sm:$0xf]
    %v51 = vld [vmem:[#allocation2 + $0x8] sm:$0xf]
    %v52 = vld [vmem:[#allocation2 + $0xc] sm:$0xf]
    %v53 = vld [vmem:[#allocation2 + $0x10] sm:$0xf]
    %v54 = vld [vmem:[#allocation2 + $0x14] sm:$0xf]
    %v55 = vld [vmem:[#allocation2 + $0x18] sm:$0xf]
    %v56 = vld [vmem:[#allocation2 + $0x1c] sm:$0xf]
    %v57 = vld [vmem:[#allocation2 + $0x20] sm:$0xf]
    %v58 = vld [vmem:[#allocation2 + $0x24] sm:$0xf]
    %v59 = vld [vmem:[#allocation2 + $0x28] sm:$0xf]
    %v60 = vld [vmem:[#allocation2 + $0x2c] sm:$0xf]
    %v61 = vld [vmem:[#allocation2 + $0x30] sm:$0xf]
    %v62 = vld [vmem:[#allocation2 + $0x34] sm:$0xf]
    %v63 = vld [vmem:[#allocation2 + $0x38] sm:$0xf]
    %v64 = vld [vmem:[#allocation2 + $0x3c] sm:$0xf]
    %v65 = vld [vmem:[#allocation2 + $0x40] sm:$0xf]
    %v66 = vld [vmem:[#allocation2 + $0x44] sm:$0xf]
    %v67 = vld [vmem:[#allocation2 + $0x48] sm:$0xf]
    %v68 = vld [vmem:[#allocation2 + $0x4c] sm:$0xf]
    %v69 = vld [vmem:[#allocation2 + $0x50] sm:$0xf]
    %v70 = vld [vmem:[#allocation2 + $0x54] sm:$0xf]
    %v71 = vld [vmem:[#allocation2 + $0x58] sm:$0xf]
    %v72 = vld [vmem:[#allocation2 + $0x5c] sm:$0xf]
    %v73 = vld [vmem:[#allocation2 + $0x60] sm:$0xf]
    %v74 = vld [vmem:[#allocation2 + $0x64] sm:$0xf]
    %v75 = vld [vmem:[#allocation2 + $0x68] sm:$0xf]
    %v76 = vld [vmem:[#allocation2 + $0x6c] sm:$0xf]
    %v77 = vld [vmem:[#allocation2 + $0x70] sm:$0xf]
    %v78 = vld [vmem:[#allocation2 + $0x74] sm:$0xf]
    %v79 = vld [vmem:[#allocation2 + $0x78] sm:$0xf]
    %v80 = vld [vmem:[#allocation2 + $0x7c] sm:$0xf]
    %v81 = vld [vmem:[#allocation2 + $0x80] sm:$0xf]
    %v82 = vld [vmem:[#allocation2 + $0x84] sm:$0xf]
    %v83 = vld [vmem:[#allocation2 + $0x88] sm:$0xf]
    %v84 = vld [vmem:[#allocation2 + $0x8c] sm:$0xf]
    %v85 = vld [vmem:[#allocation2 + $0x90] sm:$0xf]
    %v86 = vld [vmem:[#allocation2 + $0x94] sm:$0xf]
    %v87 = vld [vmem:[#allocation2 + $0x98] sm:$0xf]
    %v88 = vld [vmem:[#allocation2 + $0x9c] sm:$0xf]
    %v89 = vld [vmem:[#allocation2 + $0xa0] sm:$0xf]
    %v90 = vld [vmem:[#allocation2 + $0xa4] sm:$0xf]
    %v91 = vld [vmem:[#allocation2 + $0xa8] sm:$0xf]
    %v92 = vld [vmem:[#allocation2 + $0xac] sm:$0xf]
    %v93 = vld [vmem:[#allocation2 + $0xb0] sm:$0xf]
    %v94 = vld [vmem:[#allocation2 + $0xb4] sm:$0xf]
    %v95 = vld [vmem:[#allocation2 + $0xb8] sm:$0xf]
    %v96 = vld [vmem:[#allocation2 + $0xbc] sm:$0xf]
    %v97 = vld [vmem:[#allocation2 + $0xc0] sm:$0xf]
    %v98 = vld [vmem:[#allocation2 + $0xc4] sm:$0xf]
    %v99 = vld [vmem:[#allocation2 + $0xc8] sm:$0xf]
    %v100 = vld [vmem:[#allocation2 + $0xcc] sm:$0xf]
    %v101 = vld [vmem:[#allocation2 + $0xd0] sm:$0xf]
    %v102 = vld [vmem:[#allocation2 + $0xd4] sm:$0xf]
    %v103 = vld [vmem:[#allocation2 + $0xd8] sm:$0xf]
    %v104 = vld [vmem:[#allocation2 + $0xdc] sm:$0xf]
    %v105 = vld [vmem:[#allocation2 + $0xe0] sm:$0xf]
    %v106 = vld [vmem:[#allocation2 + $0xe4] sm:$0xf]
    %v107 = vld [vmem:[#allocation2 + $0xe8] sm:$0xf]
    %v108 = vld [vmem:[#allocation2 + $0xec] sm:$0xf]
    %v109 = vld [vmem:[#allocation2 + $0xf0] sm:$0xf]
    %v110 = vld [vmem:[#allocation2 + $0xf4] sm:$0xf]
    %v111 = vld [vmem:[#allocation2 + $0xf8] sm:$0xf]
    %v112 = vld [vmem:[#allocation2 + $0xfc] sm:$0xf]
    %v113 = vld [vmem:[#allocation2 + $0x100] sm:$0xf]
    %v114 = vld [vmem:[#allocation2 + $0x104] sm:$0xf]
    %v115 = vld [vmem:[#allocation2 + $0x108] sm:$0xf]
    %v116 = vld [vmem:[#allocation2 + $0x10c] sm:$0xf]
    %v117 = vld [vmem:[#allocation2 + $0x110] sm:$0xf]
    %v118 = vld [vmem:[#allocation2 + $0x114] sm:$0xf]
    %v119 = vld [vmem:[#allocation2 + $0x118] sm:$0xf]
    %v120 = vld [vmem:[#allocation2 + $0x11c] sm:$0xf]
    %v121 = vld [vmem:[#allocation2 + $0x120] sm:$0xf]
    %v122 = vld [vmem:[#allocation2 + $0x124] sm:$0xf]
    %v123 = vld [vmem:[#allocation2 + $0x128] sm:$0xf]
    %v124 = vld [vmem:[#allocation2 + $0x12c] sm:$0xf]
    %v125 = vld [vmem:[#allocation2 + $0x130] sm:$0xf]
    %v126 = vld [vmem:[#allocation2 + $0x134] sm:$0xf]
    %v127 = vld [vmem:[#allocation2 + $0x138] sm:$0xf]
    %v128 = vld [vmem:[#allocation2 + $0x13c] sm:$0xf]
    %v129 = vld [vmem:[#allocation2 + $0x140] sm:$0xf]
    %v130 = vld [vmem:[#allocation2 + $0x144] sm:$0xf]
    %v131 = vld [vmem:[#allocation2 + $0x148] sm:$0xf]
    %v132 = vld [vmem:[#allocation2 + $0x14c] sm:$0xf]
    %v133 = vld [vmem:[#allocation2 + $0x150] sm:$0xf]
    %v134 = vld [vmem:[#allocation2 + $0x154] sm:$0xf]
    %v135 = vld [vmem:[#allocation2 + $0x158] sm:$0xf]
    %v136 = vld [vmem:[#allocation2 + $0x15c] sm:$0xf]
    %v137 = vld [vmem:[#allocation2 + $0x160] sm:$0xf]
    %v138 = vld [vmem:[#allocation2 + $0x164] sm:$0xf]
    %v139 = vld [vmem:[#allocation2 + $0x168] sm:$0xf]
    %v140 = vld [vmem:[#allocation2 + $0x16c] sm:$0xf]
    %v141 = vld [vmem:[#allocation2 + $0x170] sm:$0xf]
    %v142 = vld [vmem:[#allocation2 + $0x174] sm:$0xf]
    %v143 = vld [vmem:[#allocation2 + $0x178] sm:$0xf]
    %v144 = vld [vmem:[#allocation2 + $0x17c] sm:$0xf]
    %v145 = vld [vmem:[#allocation2 + $0x180] sm:$0xf]
    %v146 = vld [vmem:[#allocation2 + $0x184] sm:$0xf]
    %v147 = vld [vmem:[%s2] sm:$0x1]
    %v149 = vlaneseq
    %v150 = vshrl.u32 %v149, 7
    %v151 = vsub.s32 0, %v150
    %v152 = vrot.slane %v147, %v151
    %v252 = vunpack.c.l.b16 %v49
    %v253 = vunpack.c.l.b16 %v50
    %v254 = vunpack.c.l.b16 %v51
    %v255 = vunpack.c.l.b16 %v52
    %v256 = vunpack.c.l.b16 %v53
    %v257 = vunpack.c.l.b16 %v54
    %v258 = vunpack.c.l.b16 %v55
    %v259 = vunpack.c.l.b16 %v56
    %v260 = vunpack.c.l.b16 %v57
    %v261 = vunpack.c.l.b16 %v58
    %v262 = vunpack.c.l.b16 %v59
    %v263 = vunpack.c.l.b16 %v60
    %v264 = vunpack.c.l.b16 %v61
    %v265 = vunpack.c.l.b16 %v62
    %v266 = vunpack.c.l.b16 %v63
    %v267 = vunpack.c.l.b16 %v64
    %v268 = vunpack.c.l.b16 %v65
    %v269 = vunpack.c.l.b16 %v66
    %v270 = vunpack.c.l.b16 %v67
    %v271 = vunpack.c.l.b16 %v68
    %v272 = vunpack.c.l.b16 %v69
    %v273 = vunpack.c.l.b16 %v70
    %v274 = vunpack.c.l.b16 %v71
    %v275 = vunpack.c.l.b16 %v72
    %v276 = vunpack.c.l.b16 %v73
    %v277 = vunpack.c.l.b16 %v74
    %v278 = vunpack.c.l.b16 %v75
    %v279 = vunpack.c.l.b16 %v76
    %v280 = vunpack.c.l.b16 %v77
    %v281 = vunpack.c.l.b16 %v78
    %v282 = vunpack.c.l.b16 %v79
    %v283 = vunpack.c.l.b16 %v80
    %v284 = vunpack.c.l.b16 %v81
    %v285 = vunpack.c.l.b16 %v82
    %v286 = vunpack.c.l.b16 %v83
    %v287 = vunpack.c.l.b16 %v84
    %v288 = vunpack.c.l.b16 %v85
    %v289 = vunpack.c.l.b16 %v86
    %v290 = vunpack.c.l.b16 %v87
    %v291 = vunpack.c.l.b16 %v88
    %v292 = vunpack.c.l.b16 %v89
    %v293 = vunpack.c.l.b16 %v90
    %v294 = vunpack.c.l.b16 %v91
    %v295 = vunpack.c.l.b16 %v92
    %v296 = vunpack.c.l.b16 %v93
    %v297 = vunpack.c.l.b16 %v94
    %v298 = vunpack.c.l.b16 %v95
    %v299 = vunpack.c.l.b16 %v96
    %v300 = vunpack.c.l.b16 %v97
    %v301 = vunpack.c.l.b16 %v98
    %v302 = vunpack.c.l.b16 %v99
    %v303 = vunpack.c.l.b16 %v100
    %v304 = vunpack.c.l.b16 %v101
    %v305 = vunpack.c.l.b16 %v102
    %v306 = vunpack.c.l.b16 %v103
    %v307 = vunpack.c.l.b16 %v104
    %v308 = vunpack.c.l.b16 %v105
    %v309 = vunpack.c.l.b16 %v106
    %v310 = vunpack.c.l.b16 %v107
    %v311 = vunpack.c.l.b16 %v108
    %v312 = vunpack.c.l.b16 %v109
    %v313 = vunpack.c.l.b16 %v110
    %v314 = vunpack.c.l.b16 %v111
    %v315 = vunpack.c.l.b16 %v112
    %v316 = vunpack.c.l.b16 %v113
    %v317 = vunpack.c.l.b16 %v114
    %v318 = vunpack.c.l.b16 %v115
    %v319 = vunpack.c.l.b16 %v116
    %v320 = vunpack.c.l.b16 %v117
    %v321 = vunpack.c.l.b16 %v118
    %v322 = vunpack.c.l.b16 %v119
    %v323 = vunpack.c.l.b16 %v120
    %v324 = vunpack.c.l.b16 %v121
    %v325 = vunpack.c.l.b16 %v122
    %v326 = vunpack.c.l.b16 %v123
    %v327 = vunpack.c.l.b16 %v124
    %v328 = vunpack.c.l.b16 %v125
    %v329 = vunpack.c.l.b16 %v126
    %v330 = vunpack.c.l.b16 %v127
    %v331 = vunpack.c.l.b16 %v128
    %v332 = vunpack.c.l.b16 %v129
    %v333 = vunpack.c.l.b16 %v130
    %v334 = vunpack.c.l.b16 %v131
    %v335 = vunpack.c.l.b16 %v132
    %v336 = vunpack.c.l.b16 %v133
    %v337 = vunpack.c.l.b16 %v134
    %v338 = vunpack.c.l.b16 %v135
    %v339 = vunpack.c.l.b16 %v136
    %v340 = vunpack.c.l.b16 %v137
    %v341 = vunpack.c.l.b16 %v138
    %v342 = vunpack.c.l.b16 %v139
    %v343 = vunpack.c.l.b16 %v140
    %v344 = vunpack.c.l.b16 %v141
    %v345 = vunpack.c.l.b16 %v142
    %v346 = vunpack.c.l.b16 %v143
    %v347 = vunpack.c.l.b16 %v144
    %v348 = vunpack.c.l.b16 %v145
    %v349 = vunpack.c.l.b16 %v146
    %v350 = vpack.c.b16 %v253, %v252
    %v351 = vpack.c.b16 %v255, %v254
    %v352 = vpack.c.b16 %v257, %v256
    %v353 = vpack.c.b16 %v259, %v258
    %v354 = vpack.c.b16 %v261, %v260
    %v355 = vpack.c.b16 %v263, %v262
    %v356 = vpack.c.b16 %v265, %v264
    %v357 = vpack.c.b16 %v267, %v266
    %v358 = vpack.c.b16 %v269, %v268
    %v359 = vpack.c.b16 %v271, %v270
    %v360 = vpack.c.b16 %v273, %v272
    %v361 = vpack.c.b16 %v275, %v274
    %v362 = vpack.c.b16 %v277, %v276
    %v363 = vpack.c.b16 %v279, %v278
    %v364 = vpack.c.b16 %v281, %v280
    %v365 = vpack.c.b16 %v283, %v282
    %v366 = vpack.c.b16 %v285, %v284
    %v367 = vpack.c.b16 %v287, %v286
    %v368 = vpack.c.b16 %v289, %v288
    %v369 = vpack.c.b16 %v291, %v290
    %v370 = vpack.c.b16 %v293, %v292
    %v371 = vpack.c.b16 %v295, %v294
    %v372 = vpack.c.b16 %v297, %v296
    %v373 = vpack.c.b16 %v299, %v298
    %v374 = vpack.c.b16 %v301, %v300
    %v375 = vpack.c.b16 %v303, %v302
    %v376 = vpack.c.b16 %v305, %v304
    %v377 = vpack.c.b16 %v307, %v306
    %v378 = vpack.c.b16 %v309, %v308
    %v379 = vpack.c.b16 %v311, %v310
    %v380 = vpack.c.b16 %v313, %v312
    %v381 = vpack.c.b16 %v315, %v314
    %v382 = vpack.c.b16 %v317, %v316
    %v383 = vpack.c.b16 %v319, %v318
    %v384 = vpack.c.b16 %v321, %v320
    %v385 = vpack.c.b16 %v323, %v322
    %v386 = vpack.c.b16 %v325, %v324
    %v387 = vpack.c.b16 %v327, %v326
    %v388 = vpack.c.b16 %v329, %v328
    %v389 = vpack.c.b16 %v331, %v330
    %v390 = vpack.c.b16 %v333, %v332
    %v391 = vpack.c.b16 %v335, %v334
    %v392 = vpack.c.b16 %v337, %v336
    %v393 = vpack.c.b16 %v339, %v338
    %v394 = vpack.c.b16 %v341, %v340
    %v395 = vpack.c.b16 %v343, %v342
    %v396 = vpack.c.b16 %v345, %v344
    %v397 = vpack.c.b16 %v347, %v346
    %v398 = vpack.c.b16 %v349, %v348
    %vm448 = vcmask 130048
    %v450 = vsel %vm448, %v48, 0
    %452 = vmatprep.subr.bf16.mxu0 0
    %453 = vmatpush1.bf16.msra.mxu0 %v350
    %454 = vmatprep.subr.bf16.mxu0 0
    %455 = vmatpush1.bf16.msra.mxu0 %v351
    %456 = vmatprep.subr.bf16.mxu0 0
    %457 = vmatpush1.bf16.msra.mxu0 %v352
    %458 = vmatprep.subr.bf16.mxu0 0
    %459 = vmatpush1.bf16.msra.mxu0 %v353
    %460 = vmatprep.subr.bf16.mxu0 0
    %461 = vmatpush1.bf16.msra.mxu0 %v354
    %462 = vmatprep.subr.bf16.mxu0 0
    %463 = vmatpush1.bf16.msra.mxu0 %v355
    %464 = vmatprep.subr.bf16.mxu0 0
    %465 = vmatpush1.bf16.msra.mxu0 %v356
    %466 = vmatprep.subr.bf16.mxu0 0
    %467 = vmatpush1.bf16.msra.mxu0 %v357
    %468 = vmatprep.subr.bf16.mxu0 0
    %469 = vmatpush1.bf16.msra.mxu0 %v358
    %470 = vmatprep.subr.bf16.mxu0 0
    %471 = vmatpush1.bf16.msra.mxu0 %v359
    %472 = vmatprep.subr.bf16.mxu0 0
    %473 = vmatpush1.bf16.msra.mxu0 %v360
    %474 = vmatprep.subr.bf16.mxu0 0
    %475 = vmatpush1.bf16.msra.mxu0 %v361
    %476 = vmatprep.subr.bf16.mxu0 0
    %477 = vmatpush1.bf16.msra.mxu0 %v362
    %478 = vmatprep.subr.bf16.mxu0 0
    %479 = vmatpush1.bf16.msra.mxu0 %v363
    %480 = vmatprep.subr.bf16.mxu0 0
    %481 = vmatpush1.bf16.msra.mxu0 %v364
    %482 = vmatprep.subr.bf16.mxu0 0
    %483 = vmatpush1.bf16.msra.mxu0 %v365
    %484 = vmatprep.mubr.bf16.mxu0 %v43
    %485 = vmatmul.mubr.bf16.gmra.mrb[0].mxu0 %v42
    %v486 = vpop.f32.mrb[0].mxu0
    %v487 = vadd.f32 %v152, %v486
    %v488 = vpop.f32.mrb[0].mxu0
    %v489 = vpop.f32.mrb[0].mxu0
    %v490 = vpop.f32.mrb[0].mxu0
    %491 = vdwg.mxu0
    %492 = vmatprep.subr.bf16.mxu0 0
    %493 = vmatpush1.bf16.msra.mxu0 %v366
    %494 = vmatprep.subr.bf16.mxu0 0
    %495 = vmatpush1.bf16.msra.mxu0 %v367
    %496 = vmatprep.subr.bf16.mxu0 0
    %497 = vmatpush1.bf16.msra.mxu0 %v368
    %498 = vmatprep.subr.bf16.mxu0 0
    %499 = vmatpush1.bf16.msra.mxu0 %v369
    %500 = vmatprep.subr.bf16.mxu0 0
    %501 = vmatpush1.bf16.msra.mxu0 %v370
    %502 = vmatprep.subr.bf16.mxu0 0
    %503 = vmatpush1.bf16.msra.mxu0 %v371
    %504 = vmatprep.subr.bf16.mxu0 0
    %505 = vmatpush1.bf16.msra.mxu0 %v372
    %506 = vmatprep.subr.bf16.mxu0 0
    %507 = vmatpush1.bf16.msra.mxu0 %v373
    %508 = vmatprep.subr.bf16.mxu0 0
    %509 = vmatpush1.bf16.msra.mxu0 %v374
    %510 = vmatprep.subr.bf16.mxu0 0
    %511 = vmatpush1.bf16.msra.mxu0 %v375
    %512 = vmatprep.subr.bf16.mxu0 0
    %513 = vmatpush1.bf16.msra.mxu0 %v376
    %514 = vmatprep.subr.bf16.mxu0 0
    %515 = vmatpush1.bf16.msra.mxu0 %v377
    %516 = vmatprep.subr.bf16.mxu0 0
    %517 = vmatpush1.bf16.msra.mxu0 %v378
    %518 = vmatprep.subr.bf16.mxu0 0
    %519 = vmatpush1.bf16.msra.mxu0 %v379
    %520 = vmatprep.subr.bf16.mxu0 0
    %521 = vmatpush1.bf16.msra.mxu0 %v380
    %522 = vmatprep.subr.bf16.mxu0 0
    %523 = vmatpush1.bf16.msra.mxu0 %v381
    %524 = vmatprep.mubr.bf16.mxu0 %v45
    %525 = vmatmul.mubr.bf16.gmra.mrb[0].mxu0 %v44
    %v526 = vpop.f32.mrb[0].mxu0
    %v527 = vadd.f32 %v487, %v526
    %v528 = vpop.f32.mrb[0].mxu0
    %v529 = vpop.f32.mrb[0].mxu0
    %v530 = vpop.f32.mrb[0].mxu0
    %531 = vdwg.mxu0
    %532 = vmatprep.subr.bf16.mxu0 0
    %533 = vmatpush1.bf16.msra.mxu0 %v382
    %534 = vmatprep.subr.bf16.mxu0 0
    %535 = vmatpush1.bf16.msra.mxu0 %v383
    %536 = vmatprep.subr.bf16.mxu0 0
    %537 = vmatpush1.bf16.msra.mxu0 %v384
    %538 = vmatprep.subr.bf16.mxu0 0
    %539 = vmatpush1.bf16.msra.mxu0 %v385
    %540 = vmatprep.subr.bf16.mxu0 0
    %541 = vmatpush1.bf16.msra.mxu0 %v386
    %542 = vmatprep.subr.bf16.mxu0 0
    %543 = vmatpush1.bf16.msra.mxu0 %v387
    %544 = vmatprep.subr.bf16.mxu0 0
    %545 = vmatpush1.bf16.msra.mxu0 %v388
    %546 = vmatprep.subr.bf16.mxu0 0
    %547 = vmatpush1.bf16.msra.mxu0 %v389
    %548 = vmatprep.subr.bf16.mxu0 0
    %549 = vmatpush1.bf16.msra.mxu0 %v390
    %550 = vmatprep.subr.bf16.mxu0 0
    %551 = vmatpush1.bf16.msra.mxu0 %v391
    %552 = vmatprep.subr.bf16.mxu0 0
    %553 = vmatpush1.bf16.msra.mxu0 %v392
    %554 = vmatprep.subr.bf16.mxu0 0
    %555 = vmatpush1.bf16.msra.mxu0 %v393
    %556 = vmatprep.subr.bf16.mxu0 0
    %557 = vmatpush1.bf16.msra.mxu0 %v394
    %558 = vmatprep.subr.bf16.mxu0 0
    %559 = vmatpush1.bf16.msra.mxu0 %v395
    %560 = vmatprep.subr.bf16.mxu0 0
    %561 = vmatpush1.bf16.msra.mxu0 %v396
    %562 = vmatprep.subr.bf16.mxu0 0
    %563 = vmatpush1.bf16.msra.mxu0 %v397
    %564 = vmatprep.mubr.bf16.mxu0 %v47
    %565 = vmatmul.mubr.bf16.gmra.mrb[0].mxu0 %v46
    %v566 = vpop.f32.mrb[0].mxu0
    %v567 = vadd.f32 %v527, %v566
    %v568 = vpop.f32.mrb[0].mxu0
    %v569 = vpop.f32.mrb[0].mxu0
    %v570 = vpop.f32.mrb[0].mxu0
    %571 = vdwg.mxu0
    %572 = vmatprep.subr.bf16.mxu0 0
    %573 = vmatpush1.bf16.msra.mxu0 %v398
    %574 = vmatprep.subr.bf16.mxu0 0
    %575 = vmatpush1.bf16.msra.mxu0 0
    %576 = vmatprep.subr.bf16.mxu0 0
    %577 = vmatpush1.bf16.msra.mxu0 0
    %578 = vmatprep.subr.bf16.mxu0 0
    %579 = vmatpush1.bf16.msra.mxu0 0
    %580 = vmatprep.subr.bf16.mxu0 0
    %581 = vmatpush1.bf16.msra.mxu0 0
    %582 = vmatprep.subr.bf16.mxu0 0
    %583 = vmatpush1.bf16.msra.mxu0 0
    %584 = vmatprep.subr.bf16.mxu0 0
    %585 = vmatpush1.bf16.msra.mxu0 0
    %586 = vmatprep.subr.bf16.mxu0 0
    %587 = vmatpush1.bf16.msra.mxu0 0
    %588 = vmatprep.subr.bf16.mxu0 0
    %589 = vmatpush1.bf16.msra.mxu0 0
    %590 = vmatprep.subr.bf16.mxu0 0
    %591 = vmatpush1.bf16.msra.mxu0 0
    %592 = vmatprep.subr.bf16.mxu0 0
    %593 = vmatpush1.bf16.msra.mxu0 0
    %594 = vmatprep.subr.bf16.mxu0 0
    %595 = vmatpush1.bf16.msra.mxu0 0
    %596 = vmatprep.subr.bf16.mxu0 0
    %597 = vmatpush1.bf16.msra.mxu0 0
    %598 = vmatprep.subr.bf16.mxu0 0
    %599 = vmatpush1.bf16.msra.mxu0 0
    %600 = vmatprep.subr.bf16.mxu0 0
    %601 = vmatpush1.bf16.msra.mxu0 0
    %602 = vmatprep.subr.bf16.mxu0 0
    %603 = vmatpush1.bf16.msra.mxu0 0
    %604 = vmatprep.mubr.bf16.mxu0 0
    %605 = vmatmul.mubr.bf16.gmra.mrb[0].mxu0 %v450
    %v606 = vpop.f32.mrb[0].mxu0
    %v607 = vadd.f32 %v567, %v606
    %v608 = vpop.f32.mrb[0].mxu0
    %v609 = vpop.f32.mrb[0].mxu0
    %v610 = vpop.f32.mrb[0].mxu0
    %611 = vdwg.mxu0
    %v612 = vmul.f32 %v607, 0.5
    %v613 = vmul.f32 %v607, 0.70710677
    %v614 = verf.f32.pop %v613
    %v615 = vadd.f32 %v614, 1.0
    %v616 = vmul.f32 %v612, %v615
    %v617 = vpack.c.bf16 %v616, %v616
    %v618 = vld [vmem:[%s3] sm:$0xf]
    %v619 = vld [vmem:[%s3 + $0x4] sm:$0xf]
    %v620 = vld [vmem:[%s3 + $0x8] sm:$0xf]
    %v621 = vld [vmem:[%s3 + $0xc] sm:$0xf]
    %v622 = vld [vmem:[%s3 + $0x10] sm:$0xf]
    %v623 = vld [vmem:[%s3 + $0x14] sm:$0xf]
    %v624 = vld [vmem:[%s3 + $0x18] sm:$0xf]
    %v625 = vld [vmem:[%s3 + $0x1c] sm:$0xf]
    %v626 = vld [vmem:[%s3 + $0x20] sm:$0xf]
    %v627 = vld [vmem:[%s3 + $0x24] sm:$0xf]
    %v628 = vld [vmem:[%s3 + $0x28] sm:$0xf]
    %v629 = vld [vmem:[%s3 + $0x2c] sm:$0xf]
    %v630 = vld [vmem:[%s3 + $0x30] sm:$0xf]
    %v631 = vld [vmem:[%s3 + $0x34] sm:$0xf]
    %v632 = vld [vmem:[%s3 + $0x38] sm:$0xf]
    %v633 = vld [vmem:[%s3 + $0x3c] sm:$0xf]
    %v634 = vld [vmem:[%s4] sm:$0x1]
    %v636 = vlaneseq
    %v637 = vshrl.u32 %v636, 7
    %v638 = vsub.s32 0, %v637
    %v639 = vrot.slane %v634, %v638
    %v657 = vunpack.c.l.b16 %v618
    %v658 = vunpack.c.l.b16 %v619
    %v659 = vunpack.c.l.b16 %v620
    %v660 = vunpack.c.l.b16 %v621
    %v661 = vunpack.c.l.b16 %v622
    %v662 = vunpack.c.l.b16 %v623
    %v663 = vunpack.c.l.b16 %v624
    %v664 = vunpack.c.l.b16 %v625
    %v665 = vunpack.c.l.b16 %v626
    %v666 = vunpack.c.l.b16 %v627
    %v667 = vunpack.c.l.b16 %v628
    %v668 = vunpack.c.l.b16 %v629
    %v669 = vunpack.c.l.b16 %v630
    %v670 = vunpack.c.l.b16 %v631
    %v671 = vunpack.c.l.b16 %v632
    %v672 = vunpack.c.l.b16 %v633
    %v673 = vpack.c.b16 %v658, %v657
    %v674 = vpack.c.b16 %v660, %v659
    %v675 = vpack.c.b16 %v662, %v661
    %v676 = vpack.c.b16 %v664, %v663
    %v677 = vpack.c.b16 %v666, %v665
    %v678 = vpack.c.b16 %v668, %v667
    %v679 = vpack.c.b16 %v670, %v669
    %v680 = vpack.c.b16 %v672, %v671
    %689 = vmatprep.subr.bf16.mxu0 0
    %690 = vmatpush1.bf16.msra.mxu0 %v673
    %691 = vmatprep.subr.bf16.mxu0 0
    %692 = vmatpush1.bf16.msra.mxu0 %v674
    %693 = vmatprep.subr.bf16.mxu0 0
    %694 = vmatpush1.bf16.msra.mxu0 %v675
    %695 = vmatprep.subr.bf16.mxu0 0
    %696 = vmatpush1.bf16.msra.mxu0 %v676
    %697 = vmatprep.subr.bf16.mxu0 0
    %698 = vmatpush1.bf16.msra.mxu0 %v677
    %699 = vmatprep.subr.bf16.mxu0 0
    %700 = vmatpush1.bf16.msra.mxu0 %v678
    %701 = vmatprep.subr.bf16.mxu0 0
    %702 = vmatpush1.bf16.msra.mxu0 %v679
    %703 = vmatprep.subr.bf16.mxu0 0
    %704 = vmatpush1.bf16.msra.mxu0 %v680
    %705 = vmatprep.subr.bf16.mxu0 0
    %706 = vmatpush1.bf16.msra.mxu0 0
    %707 = vmatprep.subr.bf16.mxu0 0
    %708 = vmatpush1.bf16.msra.mxu0 0
    %709 = vmatprep.subr.bf16.mxu0 0
    %710 = vmatpush1.bf16.msra.mxu0 0
    %711 = vmatprep.subr.bf16.mxu0 0
    %712 = vmatpush1.bf16.msra.mxu0 0
    %713 = vmatprep.subr.bf16.mxu0 0
    %714 = vmatpush1.bf16.msra.mxu0 0
    %715 = vmatprep.subr.bf16.mxu0 0
    %716 = vmatpush1.bf16.msra.mxu0 0
    %717 = vmatprep.subr.bf16.mxu0 0
    %718 = vmatpush1.bf16.msra.mxu0 0
    %719 = vmatprep.subr.bf16.mxu0 0
    %720 = vmatpush1.bf16.msra.mxu0 0
    %721 = vmatprep.mubr.bf16.mxu0 0
    %722 = vmatmul.mubr.bf16.gmra.mrb[0].mxu0 %v617
    %v723 = vpop.f32.mrb[0].mxu0
    %v724 = vadd.f32 %v639, %v723
    %v725 = vpop.f32.mrb[0].mxu0
    %v726 = vpop.f32.mrb[0].mxu0
    %v727 = vpop.f32.mrb[0].mxu0
    %728 = vdwg.mxu0
    %v729 = vpack.c.bf16 %v724, %v724
    %730 = vst [vmem:[%s5] sm:$0xf] %v729
    // Predicated region
    $region26: #{mlp_forward.1} parent=1 // pred_check
      _
    $region27: #{mlp_forward.1} parent=1 // pred_check_branch
      %732 = sbr.rel (0) target = $region29
    $region28: #{mlp_forward.1} parent=1 // pred_region
      _
    $region29: #{mlp_forward.1} parent=1 // pred_fallthru
      _
    // Predicated region
    $region30: #{mlp_forward.1} parent=1 // pred_check
      _
    $region31: #{mlp_forward.1} parent=1 // pred_check_branch
      %734 = sbr.rel (0) target = $region33
    $region32: #{mlp_forward.1} parent=1 // pred_region
      _
    $region33: #{mlp_forward.1} parent=1 // pred_fallthru
      _
    %735 = vsyncpa [#allocation3], 1

</llo_original>
